<compile_context>
chip_gen: v5e
topology: v5e:2x2
jax: 0.10.0
libtpu: 0.0.40
codegen_flags: <defaults>
</compile_context>

<pallas_src>
import functools

import jax
import jax.numpy as jnp
from jax.experimental import pallas as pl
from jax.experimental.pallas import tpu as pltpu


# ---------------------------------------------------------------------------
# Kernels
# ---------------------------------------------------------------------------

def _layer1_kernel(factor_ref, x_ref, h_ref, w_ref, bias_ref, out_ref,
                   *, d, k, b, num_units):
    """Standard layout: rows = batch (sublanes), cols = units (lanes)."""
    U = num_units
    factor = factor_ref[...]                                        # (TB, 1) f32
    gate = k + (1.0 - k) * jax.nn.sigmoid(d * (factor - b))         # (TB, 1) f32

    # Two accumulating MXU dots against static sublane slices of the weight
    # (zero-cost views) -- avoids materializing concat([h, x]).
    acc = jnp.dot(h_ref[...], w_ref[:U, :],
                  preferred_element_type=jnp.float32)                # (TB, TN)
    acc = acc + jnp.dot(x_ref[...], w_ref[U:, :],
                        preferred_element_type=jnp.float32)
    w = acc + bias_ref[...].astype(jnp.float32)                      # (TB, TN)
    out_ref[...] = jax.nn.sigmoid(w * gate).astype(out_ref.dtype)


def _layer1_kernel_t(factor_ref, x_ref, h_ref, wh_ref, wx_ref, bias_ref,
                     out_ref, *, d, k, b):
    """Lane-dense layout for U < 128: batch on the lane axis (transposed)."""
    factor = factor_ref[...]                                         # (1, TB) f32
    gate = k + (1.0 - k) * jax.nn.sigmoid(d * (factor - b))          # (1, TB) f32

    acc = jnp.dot(wh_ref[...], h_ref[...],
                  preferred_element_type=jnp.float32)                # (U, TB)
    acc = acc + jnp.dot(wx_ref[...], x_ref[...],
                        preferred_element_type=jnp.float32)
    w = acc + bias_ref[...].astype(jnp.float32)                      # (U,1) bcast
    out_ref[...] = jax.nn.sigmoid(w * gate).astype(out_ref.dtype)


# ---------------------------------------------------------------------------
# Tiling heuristics
# ---------------------------------------------------------------------------

_VMEM_STEP_BUDGET = 24 << 20   # per-grid-step footprint target (fits v7x easily)


def _pick_n_tile(U):
    # Tile the output/unit dim for large U so the weight streams in MXU-native
    # N tiles (256 on v6e/v7x; 128 also matches v5e's 128-wide MXUs).
    if U >= 512:
        if U % 256 == 0:
            return 256
        if U % 128 == 0:
            return 128
    return U


def _pick_batch_tile(B, U, TN):
    def step_bytes(tb):
        act = 2 * (tb * 4 + 2 * tb * U * 2)        # factor f32 + h,x bf16 (x2 buf)
        out = 2 * tb * TN * 4                      # f32 output block (x2 buf)
        wgt = 2 * (2 * U * TN * 2 + TN * 4)        # bf16 weight + f32 bias (x2 buf)
        return act + out + wgt

    ladder = (2048, 1024, 512, 256, 128, 64, 32, 16, 8)
    # Prefer >= 2 grid steps (keeps both v7x TensorCores busy) within budget.
    for tb in ladder:
        if B % tb == 0 and B // tb >= 2 and step_bytes(tb) <= _VMEM_STEP_BUDGET:
            return tb
    for tb in ladder:
        if B % tb == 0 and step_bytes(tb) <= _VMEM_STEP_BUDGET:
            return tb
    return B


def _pick_lane_tile(B, U):
    def step_bytes(tb):
        act = 2 * (tb * 4 + 2 * U * tb * 2)
        out = 2 * U * tb * 4
        wgt = 2 * (2 * U * U * 2 + U * 4)
        return act + out + wgt

    ladder = (2048, 1024, 512, 256, 128)
    for tb in ladder:
        if B % tb == 0 and B // tb >= 2 and step_bytes(tb) <= _VMEM_STEP_BUDGET:
            return tb
    for tb in ladder:
        if B % tb == 0 and step_bytes(tb) <= _VMEM_STEP_BUDGET:
            return tb
    return B


def _cost_estimate(B, U):
    return pl.CostEstimate(
        flops=4 * B * U * U,
        transcendentals=B * U + B,
        bytes_accessed=B * 4 + 2 * B * U * 2 + 2 * U * U * 2 + U * 4 + B * U * 4,
    )


_COMPILER_PARAMS = dict(vmem_limit_bytes=48 * 1024 * 1024)


# ---------------------------------------------------------------------------
# Wrappers
# ---------------------------------------------------------------------------

def _layer1_standard(factor, interact_emb, h, weight, bias, d, k, b):
    B, U = h.shape
    TN = _pick_n_tile(U)
    TB = _pick_batch_tile(B, U, TN)
    grid = (B // TB, U // TN)

    kernel = functools.partial(_layer1_kernel, d=d, k=k, b=b, num_units=U)

    return pl.pallas_call(
        kernel,
        out_shape=jax.ShapeDtypeStruct((B, U), jnp.float32),
        grid_spec=pltpu.PrefetchScalarGridSpec(
            num_scalar_prefetch=0,
            grid=grid,
            in_specs=[
                pl.BlockSpec((TB, 1), lambda i, j: (i, 0)),       # factor (f32)
                pl.BlockSpec((TB, U), lambda i, j: (i, 0)),       # interact_emb (bf16)
                pl.BlockSpec((TB, U), lambda i, j: (i, 0)),       # h (bf16)
                pl.BlockSpec((2 * U, TN), lambda i, j: (0, j)),   # weight N-tile (bf16)
                pl.BlockSpec((1, TN), lambda i, j: (0, j)),       # bias (f32)
            ],
            out_specs=pl.BlockSpec((TB, TN), lambda i, j: (i, j)),
        ),
        compiler_params=pltpu.CompilerParams(
            dimension_semantics=("parallel", "parallel"),
            **_COMPILER_PARAMS,
        ),
        cost_estimate=_cost_estimate(B, U),
    )(
        factor.astype(jnp.float32),
        interact_emb.astype(jnp.bfloat16),
        h.astype(jnp.bfloat16),
        weight.astype(jnp.bfloat16),
        bias.astype(jnp.float32),
    )


def _layer1_transposed(factor, interact_emb, h, weight, bias, d, k, b):
    """Lane-dense path for U < 128: batch is the lane axis (multiple of 128)."""
    B, U = h.shape
    TB = _pick_lane_tile(B, U)
    grid = (B // TB,)

    # Layout plumbing only: present the problem with batch on the lane axis.
    factor_t = factor.astype(jnp.float32).T            # (1, B)
    x_t = interact_emb.astype(jnp.bfloat16).T           # (U, B)
    h_t = h.astype(jnp.bfloat16).T                       # (U, B)
    wh_t = weight[:U, :].T.astype(jnp.bfloat16)          # (U, U)  acts on h
    wx_t = weight[U:, :].T.astype(jnp.bfloat16)          # (U, U)  acts on interact_emb
    bias_t = bias.astype(jnp.float32).T                  # (U, 1)

    kernel = functools.partial(_layer1_kernel_t, d=d, k=k, b=b)

    out_t = pl.pallas_call(
        kernel,
        out_shape=jax.ShapeDtypeStruct((U, B), jnp.float32),
        grid_spec=pltpu.PrefetchScalarGridSpec(
            num_scalar_prefetch=0,
            grid=grid,
            in_specs=[
                pl.BlockSpec((1, TB), lambda i: (0, i)),    # factor^T
                pl.BlockSpec((U, TB), lambda i: (0, i)),    # interact_emb^T
                pl.BlockSpec((U, TB), lambda i: (0, i)),    # h^T
                pl.BlockSpec((U, U), lambda i: (0, 0)),     # W[:U].T  (resident)
                pl.BlockSpec((U, U), lambda i: (0, 0)),     # W[U:].T  (resident)
                pl.BlockSpec((U, 1), lambda i: (0, 0)),     # bias^T   (resident)
            ],
            out_specs=pl.BlockSpec((U, TB), lambda i: (0, i)),
        ),
        compiler_params=pltpu.CompilerParams(
            dimension_semantics=("parallel",),
            **_COMPILER_PARAMS,
        ),
        cost_estimate=_cost_estimate(B, U),
    )(factor_t, x_t, h_t, wh_t, wx_t, bias_t)

    # TODO(synk): have the LBKT recurrence consume the (U, B) lane-dense slab
    # directly so this transpose-back disappears.
    return out_t.T


def layer1_forward(factor, interact_emb, h, weight, bias, *, d=10.0, k=0.3, b=0.3):
    B, U = h.shape
    assert interact_emb.shape == (B, U)
    assert factor.shape == (B, 1)
    assert weight.shape == (2 * U, U)
    assert bias.shape == (1, U)
    d, k, b = float(d), float(k), float(b)

    if U < 128 and B >= 128 and B % 128 == 0:
        return _layer1_transposed(factor, interact_emb, h, weight, bias, d, k, b)
    return _layer1_standard(factor, interact_emb, h, weight, bias, d, k, b)


# ---------------------------------------------------------------------------
# Reference + demo
# ---------------------------------------------------------------------------

def _reference(factor, interact_emb, h, weight, bias, *, d=10.0, k=0.3, b=0.3):
    gate = k + (1.0 - k) / (1.0 + jnp.exp(-d * (factor - b)))
    w = jnp.concatenate([h, interact_emb], axis=-1) @ weight + bias
    return jax.nn.sigmoid(w * gate)


def _make_inputs(key, B, U):
    k_f, k_x, k_h, k_w, k_b = jax.random.split(key, 5)
    factor = jax.random.uniform(k_f, (B, 1), dtype=jnp.float32)
    interact_emb = jax.random.normal(k_x, (B, U), dtype=jnp.float32)
    h = jax.random.normal(k_h, (B, U), dtype=jnp.float32)
    w_std = (2.0 / (2 * U + U)) ** 0.5
    weight = w_std * jax.random.normal(k_w, (2 * U, U), dtype=jnp.float32)
    b_std = (2.0 / (1 + U)) ** 0.5
    bias = b_std * jax.random.normal(k_b, (1, U), dtype=jnp.float32)
    return factor, interact_emb, h, weight, bias


if __name__ == "__main__":
    key = jax.random.PRNGKey(0)
    cases = [
        (8, 32),      # tiny module-like demo -> standard path, single grid step
        (256, 32),    # U < 128, B % 128 == 0  -> lane-dense transposed path, 2 tiles
        (16, 512),    # large U               -> standard path with N-tiling
    ]
    tol = 2e-2  # bf16 streaming of h/x/weight (accumulation stays f32)

    for idx, (B, U) in enumerate(cases):
        key, sub = jax.random.split(key)
        factor, interact_emb, h, weight, bias = _make_inputs(sub, B, U)
        out = layer1_forward(factor, interact_emb, h, weight, bias)
        out = jax.block_until_ready(out)
        ref = _reference(factor, interact_emb, h, weight, bias)
        assert out.shape == (B, U), f"case {idx}: bad shape {out.shape}"
        err = float(jnp.max(jnp.abs(out - ref)))
        assert err < tol, f"case {idx} (B={B}, U={U}): max err {err} vs reference"

    print("KERNEL_OK")
</pallas_src>

<mosaic_0001>
module attributes {stable_mosaic.version = 11 : i64} {
  func.func @_layer1_kernel(%arg0: i32, %arg1: i32, %arg2: memref<8x1xf32, #tpu.memory_space<vmem>>, %arg3: memref<8x32xbf16, #tpu.memory_space<vmem>>, %arg4: memref<8x32xbf16, #tpu.memory_space<vmem>>, %arg5: memref<64x32xbf16, #tpu.memory_space<vmem>>, %arg6: memref<1x32xf32, #tpu.memory_space<vmem>>, %arg7: memref<8x32xf32, #tpu.memory_space<vmem>>) attributes {dimension_semantics = [#tpu.dimension_semantics<parallel>, #tpu.dimension_semantics<parallel>], iteration_bounds = array<i64: 1, 1>, scalar_prefetch = 0 : i64, scratch_operands = 0 : i64, tpu.core_type = #tpu.core_type<tc>, window_params = [{transform_indices = @transform_0, window_bounds = array<i64: 8, 1>}, {transform_indices = @transform_1, window_bounds = array<i64: 8, 32>}, {transform_indices = @transform_2, window_bounds = array<i64: 8, 32>}, {transform_indices = @transform_3, window_bounds = array<i64: 64, 32>}, {transform_indices = @transform_4, window_bounds = array<i64: 1, 32>}, {transform_indices = @transform_5, window_bounds = array<i64: 8, 32>}]} {
    %c0 = arith.constant 0 : index
    %c0_0 = arith.constant 0 : index
    %0 = vector.load %arg2[%c0, %c0_0] : memref<8x1xf32, #tpu.memory_space<vmem>>, vector<8x1xf32>
    %cst = arith.constant 3.000000e-01 : f32
    %1 = vector.broadcast %cst : f32 to vector<8x1xf32>
    %2 = arith.subf %0, %1 : vector<8x1xf32>
    %cst_1 = arith.constant 1.000000e+01 : f32
    %3 = vector.broadcast %cst_1 : f32 to vector<8x1xf32>
    %4 = arith.mulf %3, %2 : vector<8x1xf32>
    %5 = arith.negf %4 : vector<8x1xf32>
    %6 = math.exp %5 : vector<8x1xf32>
    %cst_2 = arith.constant 1.000000e+00 : f32
    %7 = vector.broadcast %cst_2 : f32 to vector<8x1xf32>
    %8 = arith.addf %7, %6 : vector<8x1xf32>
    %9 = arith.divf %7, %8 : vector<8x1xf32>
    %cst_3 = arith.constant 0.699999988 : f32
    %10 = vector.broadcast %cst_3 : f32 to vector<8x1xf32>
    %11 = arith.mulf %10, %9 : vector<8x1xf32>
    %cst_4 = arith.constant 3.000000e-01 : f32
    %12 = vector.broadcast %cst_4 : f32 to vector<8x1xf32>
    %13 = arith.addf %12, %11 : vector<8x1xf32>
    %c0_5 = arith.constant 0 : index
    %c0_6 = arith.constant 0 : index
    %14 = vector.load %arg4[%c0_5, %c0_6] : memref<8x32xbf16, #tpu.memory_space<vmem>>, vector<8x32xbf16>
    %c0_7 = arith.constant 0 : index
    %c0_8 = arith.constant 0 : index
    %15 = vector.load %arg5[%c0_7, %c0_8] : memref<64x32xbf16, #tpu.memory_space<vmem>>, vector<32x32xbf16>
    %cst_9 = arith.constant dense<0.000000e+00> : vector<8x32xf32>
    %16 = tpu.matmul %14, %15, %cst_9 {dimension_numbers = #tpu.dot_dimension_numbers<[1], [0], [0], [1], [0, 0, 1, 1], [], []>} : vector<8x32xbf16>, vector<32x32xbf16>, vector<8x32xf32> -> vector<8x32xf32>
    %c0_10 = arith.constant 0 : index
    %c0_11 = arith.constant 0 : index
    %17 = vector.load %arg3[%c0_10, %c0_11] : memref<8x32xbf16, #tpu.memory_space<vmem>>, vector<8x32xbf16>
    %c32 = arith.constant 32 : index
    %c0_12 = arith.constant 0 : index
    %18 = vector.load %arg5[%c32, %c0_12] : memref<64x32xbf16, #tpu.memory_space<vmem>>, vector<32x32xbf16>
    %cst_13 = arith.constant dense<0.000000e+00> : vector<8x32xf32>
    %19 = tpu.matmul %17, %18, %cst_13 {dimension_numbers = #tpu.dot_dimension_numbers<[1], [0], [0], [1], [0, 0, 1, 1], [], []>} : vector<8x32xbf16>, vector<32x32xbf16>, vector<8x32xf32> -> vector<8x32xf32>
    %20 = arith.addf %16, %19 : vector<8x32xf32>
    %c0_14 = arith.constant 0 : index
    %c0_15 = arith.constant 0 : index
    %21 = vector.load %arg6[%c0_14, %c0_15] : memref<1x32xf32, #tpu.memory_space<vmem>>, vector<1x32xf32>
    %22 = vector.broadcast %21 : vector<1x32xf32> to vector<8x32xf32>
    %23 = arith.addf %20, %22 : vector<8x32xf32>
    %24 = vector.broadcast %13 : vector<8x1xf32> to vector<8x32xf32>
    %25 = arith.mulf %23, %24 : vector<8x32xf32>
    %26 = arith.negf %25 : vector<8x32xf32>
    %27 = math.exp %26 : vector<8x32xf32>
    %cst_16 = arith.constant 1.000000e+00 : f32
    %28 = vector.broadcast %cst_16 : f32 to vector<8x32xf32>
    %29 = arith.addf %28, %27 : vector<8x32xf32>
    %30 = arith.divf %28, %29 : vector<8x32xf32>
    %c0_17 = arith.constant 0 : index
    %c0_18 = arith.constant 0 : index
    %31 = vector.load %arg7[%c0_17, %c0_18] : memref<8x32xf32, #tpu.memory_space<vmem>>, vector<8x32xf32>
    tpu.vector_store %arg7[%c0_17, %c0_18], %30 {strides = array<i32>} : memref<8x32xf32, #tpu.memory_space<vmem>>, vector<8x32xf32>,
    return
  }
  func.func @transform_0(%arg0: i32, %arg1: i32) -> (i32, i32) {
    %c0_i32 = arith.constant 0 : i32
    %c0_i32_0 = arith.constant 0 : i32
    return %arg0, %c0_i32 : i32, i32
  }
  func.func @transform_1(%arg0: i32, %arg1: i32) -> (i32, i32) {
    %c0_i32 = arith.constant 0 : i32
    %c0_i32_0 = arith.constant 0 : i32
    return %arg0, %c0_i32 : i32, i32
  }
  func.func @transform_2(%arg0: i32, %arg1: i32) -> (i32, i32) {
    %c0_i32 = arith.constant 0 : i32
    %c0_i32_0 = arith.constant 0 : i32
    return %arg0, %c0_i32 : i32, i32
  }
  func.func @transform_3(%arg0: i32, %arg1: i32) -> (i32, i32) {
    %c0_i32 = arith.constant 0 : i32
    %c0_i32_0 = arith.constant 0 : i32
    return %c0_i32, %arg1 : i32, i32
  }
  func.func @transform_4(%arg0: i32, %arg1: i32) -> (i32, i32) {
    %c0_i32 = arith.constant 0 : i32
    %c0_i32_0 = arith.constant 0 : i32
    return %c0_i32, %arg1 : i32, i32
  }
  func.func @transform_5(%arg0: i32, %arg1: i32) -> (i32, i32) {
    %c0_i32 = arith.constant 0 : i32
    return %arg0, %arg1 : i32, i32
  }
}

</mosaic_0001>

<llo_original>
// kernel: tpu_custom_call.1
$region0: #{tpu_custom_call.1}
  #allocation0 [shape = 'u32[]', space=smem, size = 0x4, offset = 0x4, fixed_abs, tag = 'smem constant byte address 0x4 - core index']
  #allocation1 [shape = 'u32[72,128]{1,0:T(1,128)}', space=vmem, size = 0x9000, scoped, tag = 'internal scratch']
  %s0 = inlined_call_operand.vmem [shape: f32[8,1], index: 0, kind: input, shape index: {}]
  %s1 = inlined_call_operand.vmem [shape: bf16[8,32], index: 1, kind: input, shape index: {}]
  %s2 = inlined_call_operand.vmem [shape: bf16[8,32], index: 2, kind: input, shape index: {}]
  %s3 = inlined_call_operand.vmem [shape: bf16[64,32], index: 3, kind: input, shape index: {}]
  %s4 = inlined_call_operand.vmem [shape: f32[1,32], index: 4, kind: input, shape index: {}]
  %s5 = inlined_call_operand.hbm [shape: f32[8,32], index: 5, kind: output, shape index: {}]
  %s6 = sld [smem:[#allocation0]]
  $region30: #{tpu_custom_call.1} parent=0
    _
  %s8 = ssub.s32 1, %s6
  %s9 = scalar_select 0, %s8, %s6
  $region1: #{tpu_custom_call.1} parent=0
    #allocation2 [shape = 'u8[4096]{0}', space=vmem, size = 0x1000, scoped, tag = 'output window, operand 0, single buffered']
    #allocation3 [shape = 's32[1]{0}', space=sflag, size = 0x4, scoped, tag = 'scoped memory for tpu_custom_call.1']
    %10 = vsyncpa [#allocation3], 0
    // Predicated region
    $region2: #{tpu_custom_call.1} parent=1 // pred_check
      _
    $region3: #{tpu_custom_call.1} parent=1 // pred_check_branch
      %12 = sbr.rel (0) target = $region5
    $region4: #{tpu_custom_call.1} parent=1 // pred_region
      _
    $region5: #{tpu_custom_call.1} parent=1 // pred_fallthru
      _
    // Predicated region
    $region6: #{tpu_custom_call.1} parent=1 // pred_check
      _
    $region7: #{tpu_custom_call.1} parent=1 // pred_check_branch
      %14 = sbr.rel (0) target = $region9
    $region8: #{tpu_custom_call.1} parent=1 // pred_region
      _
    $region9: #{tpu_custom_call.1} parent=1 // pred_fallthru
      _
    // Predicated region
    $region10: #{tpu_custom_call.1} parent=1 // pred_check
      _
    $region11: #{tpu_custom_call.1} parent=1 // pred_check_branch
      %16 = sbr.rel (0) target = $region13
    $region12: #{tpu_custom_call.1} parent=1 // pred_region
      _
    $region13: #{tpu_custom_call.1} parent=1 // pred_fallthru
      _
    // Predicated region
    $region14: #{tpu_custom_call.1} parent=1 // pred_check
      _
    $region15: #{tpu_custom_call.1} parent=1 // pred_check_branch
      %18 = sbr.rel (0) target = $region17
    $region16: #{tpu_custom_call.1} parent=1 // pred_region
      _
    $region17: #{tpu_custom_call.1} parent=1 // pred_fallthru
      _
    // Predicated region
    $region18: #{tpu_custom_call.1} parent=1 // pred_check
      _
    $region19: #{tpu_custom_call.1} parent=1 // pred_check_branch
      %20 = sbr.rel (0) target = $region21
    $region20: #{tpu_custom_call.1} parent=1 // pred_region
      _
    $region21: #{tpu_custom_call.1} parent=1 // pred_fallthru
      _
    %v22 = vld [vmem:[%s0] sm:$0xff]
    %v23 = vsub.f32 %v22, 0.3
    %v24 = vmul.f32 %v23, 10.0
    %v25 = vxor.u32 %v24, 2147483648
    %v26 = vmul.f32 %v25, 1.442695
    %v27 = vpow.pop %v26
    %v28 = vadd.f32 %v27, 1.0
    %v29 = vrcp.pop %v28
    %v30 = vmul.f32 %v28, %v29
    %v31 = vsub.f32 1.0, %v30
    %v32 = vmul.f32 %v29, %v31
    %v33 = vadd.f32 %v29, %v32
    %vm34 = vweird.f32 %v28
    %vm35 = vweird.f32 %v29
    %vm36 = vmor %vm34, %vm35
    %v37 = vsel %vm36, %v29, %v33
    %v38 = vand.u32 2147483647, %v28
    %vm39 = vcmp.eq.f32.partialorder %v38, 8.507059e+37
    %v40 = vand.u32 %v28, 2147483648
    %v41 = vor.u32 1.1754944e-38, %v40
    %v42 = vsel %vm39, %v41, %v37
    %v43 = vmul.f32 1.0, %v42
    %v44 = vmul.f32 %v43, 0.7
    %v45 = vadd.f32 %v44, 0.3
    %v46 = vld [vmem:[%s2] sm:$0xf]
    %v47 = vld [vmem:[%s3] sm:$0xf]
    %v48 = vld [vmem:[%s3 + $0x4] sm:$0xf]
    %v49 = vld [vmem:[%s3 + $0x8] sm:$0xf]
    %v50 = vld [vmem:[%s3 + $0xc] sm:$0xf]
    %v51 = vld [vmem:[%s1] sm:$0xf]
    %v52 = vld [vmem:[%s3 + $0x10] sm:$0xf]
    %v53 = vld [vmem:[%s3 + $0x14] sm:$0xf]
    %v54 = vld [vmem:[%s3 + $0x18] sm:$0xf]
    %v55 = vld [vmem:[%s3 + $0x1c] sm:$0xf]
    %v60 = vunpack.c.l.b16 %v52
    %v61 = vunpack.c.l.b16 %v53
    %v62 = vunpack.c.l.b16 %v54
    %v63 = vunpack.c.l.b16 %v55
    %v64 = vpack.c.b16 %v61, %v60
    %v65 = vpack.c.b16 %v63, %v62
    %vm68 = vcmask 261120
    %v70 = vsel %vm68, %v51, 0
    %72 = vmatpush.bf16.msra.mxu0 0
    %73 = vmatpush.bf16.msra.mxu0 0
    %74 = vmatpush.bf16.msra.mxu0 0
    %75 = vmatpush.bf16.msra.mxu0 0
    %76 = vmatpush.bf16.msra.mxu0 0
    %77 = vmatpush.bf16.msra.mxu0 0
    %78 = vmatpush.bf16.msra.mxu0 %v65
    %79 = vmatpush.bf16.msra.mxu0 %v64
    %80 = vmatmul.bf16.gmra.mxu0 %v70
    %v81 = vpop.f32.mrf.mxu0
    %v82 = vadd.f32 0.0, %v81
    %v83 = vpop.f32.mrf.mxu0
    %84 = vdwg.mxu0
    %v89 = vunpack.c.l.b16 %v47
    %v90 = vunpack.c.l.b16 %v48
    %v91 = vunpack.c.l.b16 %v49
    %v92 = vunpack.c.l.b16 %v50
    %v93 = vpack.c.b16 %v90, %v89
    %v94 = vpack.c.b16 %v92, %v91
    %v98 = vsel %vm68, %v46, 0
    %100 = vmatpush.bf16.msra.mxu0 0
    %101 = vmatpush.bf16.msra.mxu0 0
    %102 = vmatpush.bf16.msra.mxu0 0
    %103 = vmatpush.bf16.msra.mxu0 0
    %104 = vmatpush.bf16.msra.mxu0 0
    %105 = vmatpush.bf16.msra.mxu0 0
    %106 = vmatpush.bf16.msra.mxu0 %v94
    %107 = vmatpush.bf16.msra.mxu0 %v93
    %108 = vmatmul.bf16.gmra.mxu0 %v98
    %v109 = vpop.f32.mrf.mxu0
    %v110 = vadd.f32 %v82, %v109
    %v111 = vpop.f32.mrf.mxu0
    %112 = vdwg.mxu0
    %v113 = vld [vmem:[%s4] sm:$0x1]
    %v115 = vperm.slane %v113, 0
    %v117 = vadd.f32 %v110, %v115
    %119 = vset.pattern.permute.xlu0 0
    %120 = vperm.xlu0 %119, %v45
    %v121 = vpop.permute.xlu0 %120
    %v123 = vmul.f32 %v117, %v121
    %v124 = vxor.u32 %v123, 2147483648
    %v125 = vmul.f32 %v124, 1.442695
    %v126 = vpow.pop %v125
    %v127 = vadd.f32 %v126, 1.0
    %v128 = vrcp.pop %v127
    %v129 = vmul.f32 %v127, %v128
    %v130 = vsub.f32 1.0, %v129
    %v131 = vmul.f32 %v128, %v130
    %v132 = vadd.f32 %v128, %v131
    %vm133 = vweird.f32 %v127
    %vm134 = vweird.f32 %v128
    %vm135 = vmor %vm133, %vm134
    %v136 = vsel %vm135, %v128, %v132
    %v137 = vand.u32 2147483647, %v127
    %vm138 = vcmp.eq.f32.partialorder %v137, 8.507059e+37
    %v139 = vand.u32 %v127, 2147483648
    %v140 = vor.u32 1.1754944e-38, %v139
    %v141 = vsel %vm138, %v140, %v136
    %v142 = vmul.f32 1.0, %v141
    %143 = vst.msk [vmem:[#allocation2] sm:$0xff] %vm68, %v142
    // Predicated region
    $region22: #{tpu_custom_call.1} parent=1 // pred_check
      _
    $region23: #{tpu_custom_call.1} parent=1 // pred_check_branch
      %145 = sbr.rel (0) target = $region25
    $region24: #{tpu_custom_call.1} parent=1 // pred_region
      %147 = vsyncadd [#allocation3], 0
      %s149 = sshll.u32 [#allocation2], 4
      %s150 = int_to_ptr.vmem [resolvable:$true] %s149
      %s151 = sshll.u32 %s5, 4
      %s152 = int_to_ptr.hbm [resolvable:$true] %s151
      %154 = dma.vmem_to_hbm [thread:$0]  %s150, 128, %s152, [#allocation3]
    $region25: #{tpu_custom_call.1} parent=1 // pred_fallthru
      _
    // Predicated region
    $region26: #{tpu_custom_call.1} parent=1 // pred_check
      _
    $region27: #{tpu_custom_call.1} parent=1 // pred_check_branch
      %156 = sbr.rel (0) target = $region29
    $region28: #{tpu_custom_call.1} parent=1 // pred_region
      %158 = dma.done [#allocation3], 128
    $region29: #{tpu_custom_call.1} parent=1 // pred_fallthru
      _
    %159 = vsyncpa [#allocation3], 1

</llo_original>
